<compile_context>
chip_gen: v6e
topology: v6e:2x2x1
jax: 0.10.0
libtpu: 0.0.40
codegen_flags: <defaults>
</compile_context>

<pallas_src>
import functools

import jax
import jax.numpy as jnp
from jax import lax
from jax.experimental import pallas as pl
from jax.experimental.pallas import tpu as pltpu

_LANE = 128
_VMEM_LIMIT = 32 * 1024 * 1024       # explicit: v5e default scoped VMEM is 16 MiB
_RAGGED_BUF_CAP = 12 * 1024 * 1024   # padded-VMEM cap per buffer on the ragged path


def _round_up(x, m):
    return ((x + m - 1) // m) * m


def _round_down(x, m):
    return (x // m) * m


def _largest_divisor_leq(n, cap):
    cap = max(1, min(n, cap))
    for d in range(cap, 0, -1):
        if n % d == 0:
            return d
    return 1


def _pick_tile_bytes():
    """Logical HBM bytes streamed per grid step (generation-aware)."""
    tile = 4 * 1024 * 1024                      # good for v5e / v6e
    try:
        info = pltpu.get_tpu_info()
        vmem = getattr(info, "vmem_capacity_bytes", None)
        if vmem is not None and vmem <= 96 * 1024 * 1024:
            tile = 8 * 1024 * 1024              # v7x-class: faster HBM, bigger tiles
    except Exception:
        pass
    return tile


def _l_color_kernel(x_ref, o_ref, acc_ref, *, inv_hw, tail_limit):
    # x_ref:   (TB, 3, s_tile, 128)  lane-dense chunk   (aligned path), or
    #          (TB, 3, s_block)      flat spatial chunk (ragged path)
    # o_ref:   (TB, 1, 1, 1)         per-image scalar loss (float32)
    # acc_ref: (TB, 3, 128) / (TB, 3, 1) f32 lane-partial channel sums
    t = pl.program_id(1)
    nt = pl.num_programs(1)
    flat = len(x_ref.shape) == 3

    @pl.when(t == 0)
    def _init():
        acc_ref[...] = jnp.zeros_like(acc_ref)

    def _accumulate(xv):
        if flat:
            acc_ref[...] += jnp.sum(xv, axis=2, keepdims=True)    # (TB,3,1)
        else:
            acc_ref[...] += jnp.sum(xv, axis=2)                   # (TB,3,128)

    if tail_limit is None:
        # Evenly tiled: plain VPU accumulate every step.
        _accumulate(x_ref[...].astype(jnp.float32))
    else:
        # Hot loop untouched; only the last step pays for masking the OOB
        # garbage of the partial block (so there is never a wrapper pad).
        @pl.when(t < nt - 1)
        def _hot():
            _accumulate(x_ref[...].astype(jnp.float32))

        @pl.when(t == nt - 1)
        def _tail():
            xv = x_ref[...].astype(jnp.float32)
            pos = lax.broadcasted_iota(jnp.int32, xv.shape, 2)
            _accumulate(jnp.where(pos < tail_limit, xv, 0.0))

    @pl.when(t == nt - 1)
    def _finalize():
        # One cross-lane (XLU) reduce + epilogue per batch block.
        ch = jnp.sum(acc_ref[...], axis=-1) * inv_hw              # (TB, 3)
        mr = ch[:, 0:1]
        mg = ch[:, 1:2]
        mb = ch[:, 2:3]
        drg = (mr - mg) ** 2
        drb = (mr - mb) ** 2
        dgb = (mb - mg) ** 2
        k = jnp.sqrt(drg * drg + drb * drb + dgb * dgb)           # (TB, 1)
        o_ref[...] = k[:, :, None, None].astype(o_ref.dtype)      # (TB,1,1,1)


def l_color(x, *, tile_bytes=None):
    """x: (B, 3, H, W) float (f32 or bf16) -> (B, 1, 1, 1) float32."""
    b, c, h, w = x.shape
    assert c == 3, "L_color expects 3 channels (RGB)"
    hw = h * w
    inv_hw = 1.0 / hw
    itemsize = jnp.dtype(x.dtype).itemsize
    sub_tile = max(8, 32 // itemsize)        # native sublane tile (8 f32, 16 bf16)
    if tile_bytes is None:
        tile_bytes = _pick_tile_bytes()

    # Keep >= 2 batch blocks when B >= 2 so both v7x TensorCores get work;
    # tb always divides B -> no batch padding, no OOB batch rows.
    tb_parallel_cap = max(1, b // 2)

    aligned = (hw % _LANE == 0)
    if aligned:
        # ---- lane-dense path: (B, 3, S_total, 128), zero-copy reshape -----
        s_total = hw // _LANE
        s_budget = max(sub_tile,
                       _round_down(tile_bytes // (3 * itemsize * _LANE), sub_tile))
        if s_total <= s_budget:
            nt, s_tile = 1, s_total
            per_elem = 3 * s_total * _LANE * itemsize
            tb = _largest_divisor_leq(
                b, min(tb_parallel_cap, max(1, tile_bytes // max(1, per_elem))))
        else:
            nt, s_tile, tb = pl.cdiv(s_total, s_budget), s_budget, 1
        tail_limit = None if nt * s_tile == s_total else s_total - (nt - 1) * s_tile
        xf = x.reshape(b, 3, s_total, _LANE)
        block = (tb, 3, s_tile, _LANE)
        index_map = lambda i, t: (i, 0, t, 0)
        acc_shape = (tb, 3, _LANE)
        buf_bytes = tb * 3 * _round_up(s_tile, sub_tile) * _LANE * itemsize
    else:
        # ---- ragged H*W: flat (B, 3, hw) view, tail masked in-kernel -------
        pad_rows = _round_up(3, sub_tile)    # VMEM sublane padding of the "3" dim
        s_cap = max(_LANE,
                    _round_down(_RAGGED_BUF_CAP // (pad_rows * itemsize), _LANE))
        s_budget = max(_LANE,
                       min(s_cap, _round_down(tile_bytes // (3 * itemsize), _LANE)))
        if hw <= s_budget:
            nt, s_block = 1, hw
            per_elem = pad_rows * _round_up(hw, _LANE) * itemsize
            tb = _largest_divisor_leq(
                b, min(tb_parallel_cap, max(1, _RAGGED_BUF_CAP // max(1, per_elem))))
        else:
            nt, s_block, tb = pl.cdiv(hw, s_budget), s_budget, 1
        tail_limit = None if nt * s_block == hw else hw - (nt - 1) * s_block
        xf = x.reshape(b, 3, hw)
        block = (tb, 3, s_block)
        index_map = lambda i, t: (i, 0, t)
        acc_shape = (tb, 3, 1)
        buf_bytes = tb * pad_rows * _round_up(s_block, _LANE) * itemsize

    # Triple-buffer the streaming path when there is VMEM headroom.
    n_buffers = 3 if (nt > 1 and 3 * buf_bytes <= 24 * 1024 * 1024) else None

    kernel = functools.partial(_l_color_kernel, inv_hw=inv_hw, tail_limit=tail_limit)

    def _build(buffers):
        in_spec = pl.BlockSpec(block, index_map)
        if buffers is not None:
            try:
                in_spec = pl.BlockSpec(block, index_map,
                                       pipeline_mode=pl.Buffered(buffers))
            except Exception:
                in_spec = pl.BlockSpec(block, index_map)
        return pl.pallas_call(
            kernel,
            out_shape=jax.ShapeDtypeStruct((b, 1, 1, 1), jnp.float32),
            grid_spec=pltpu.PrefetchScalarGridSpec(
                num_scalar_prefetch=0,
                grid=(b // tb, nt),
                in_specs=[in_spec],
                out_specs=pl.BlockSpec((tb, 1, 1, 1), lambda i, t: (i, 0, 0, 0)),
                scratch_shapes=[pltpu.VMEM(acc_shape, jnp.float32)],
            ),
            compiler_params=pltpu.CompilerParams(
                dimension_semantics=("parallel", "arbitrary"),
                vmem_limit_bytes=_VMEM_LIMIT,
            ),
            cost_estimate=pl.CostEstimate(
                flops=3 * b * hw + 16 * b,
                transcendentals=b,
                bytes_accessed=b * 3 * hw * itemsize + 4 * b,
            ),
        )

    if n_buffers is None:
        return _build(None)(xf)
    try:
        return _build(n_buffers)(xf)
    except Exception:
        # Pallas build without pipeline_mode / Buffered support.
        return _build(None)(xf)


def l_color_ref(x):
    mean_rgb = jnp.mean(x.astype(jnp.float32), axis=(2, 3), keepdims=True)  # (B,3,1,1)
    mr = mean_rgb[:, 0:1]
    mg = mean_rgb[:, 1:2]
    mb = mean_rgb[:, 2:3]
    drg = (mr - mg) ** 2
    drb = (mr - mb) ** 2
    dgb = (mb - mg) ** 2
    return jnp.sqrt(drg ** 2 + drb ** 2 + dgb ** 2)                          # (B,1,1,1)


if __name__ == "__main__":
    key = jax.random.PRNGKey(0)
    ks = jax.random.split(key, 5)

    # 1) Small aligned images, batched (tb > 1) single-tile path.
    x1 = jax.random.uniform(ks[0], (8, 3, 16, 16), dtype=jnp.float32)
    out1 = jax.block_until_ready(l_color(x1))
    assert out1.shape == (8, 1, 1, 1), out1.shape
    assert jnp.allclose(out1, l_color_ref(x1), atol=1e-6, rtol=1e-4)

    # 2) Ragged H*W (not a multiple of 128): flat path, no wrapper pad.
    x2 = jax.random.uniform(ks[1], (3, 3, 33, 37), dtype=jnp.float32)
    out2 = jax.block_until_ready(l_color(x2))
    assert jnp.allclose(out2, l_color_ref(x2), atol=1e-6, rtol=1e-4)

    # 3) Aligned multi-tile streaming path with a masked ragged last tile
    #    (tiny tile budget forces nt > 1 and Buffered(3)).
    x3 = jax.random.uniform(ks[2], (2, 3, 32, 48), dtype=jnp.float32)
    out3 = jax.block_until_ready(l_color(x3, tile_bytes=4096))
    assert jnp.allclose(out3, l_color_ref(x3), atol=1e-6, rtol=1e-4)

    # 4) Ragged multi-tile path with in-kernel tail masking.
    x4 = jax.random.uniform(ks[3], (1, 3, 40, 50), dtype=jnp.float32)
    out4 = jax.block_until_ready(l_color(x4, tile_bytes=4096))
    assert jnp.allclose(out4, l_color_ref(x4), atol=1e-6, rtol=1e-4)

    # 5) bf16 input (f32 accumulation in-kernel; f32 output).
    x5 = jax.random.uniform(ks[4], (2, 3, 16, 16), dtype=jnp.bfloat16)
    out5 = jax.block_until_ready(l_color(x5))
    assert out5.dtype == jnp.float32
    assert jnp.allclose(out5, l_color_ref(x5), atol=1e-5, rtol=1e-3)

    print("KERNEL_OK")
</pallas_src>

<mosaic_0001>
module attributes {stable_mosaic.version = 11 : i64} {
  func.func @_l_color_kernel(%arg0: i32, %arg1: i32, %arg2: memref<4x3x2x128xf32, #tpu.memory_space<vmem>>, %arg3: memref<4x1x1x1xf32, #tpu.memory_space<vmem>>, %arg4: memref<4x3x128xf32, #tpu.memory_space<vmem>>) attributes {dimension_semantics = [#tpu.dimension_semantics<parallel>, #tpu.dimension_semantics<arbitrary>], iteration_bounds = array<i64: 2, 1>, scalar_prefetch = 0 : i64, scratch_operands = 1 : i64, tpu.core_type = #tpu.core_type<tc>, window_params = [{transform_indices = @transform_0, window_bounds = array<i64: 4, 3, 2, 128>}, {transform_indices = @transform_1, window_bounds = array<i64: 4, 1, 1, 1>}]} {
    %c0_i32 = arith.constant 0 : i32
    %0 = arith.cmpi eq, %arg1, %c0_i32 : i32
    %1 = arith.extui %0 : i1 to i32
    %c0_i32_0 = arith.constant 0 : i32
    %2 = arith.cmpi ne, %1, %c0_i32_0 : i32
    scf.if %2 {
      %cst_12 = arith.constant 0.000000e+00 : f32
      %11 = vector.broadcast %cst_12 : f32 to vector<4x3x128xf32>
      %c0_13 = arith.constant 0 : index
      %c0_14 = arith.constant 0 : index
      %c0_15 = arith.constant 0 : index
      %12 = vector.load %arg4[%c0_13, %c0_14, %c0_15] : memref<4x3x128xf32, #tpu.memory_space<vmem>>, vector<4x3x128xf32>
      tpu.vector_store %arg4[%c0_13, %c0_14, %c0_15], %11 {strides = array<i32>} : memref<4x3x128xf32, #tpu.memory_space<vmem>>, vector<4x3x128xf32>,
    } else {
    }
    %c0 = arith.constant 0 : index
    %c0_1 = arith.constant 0 : index
    %c0_2 = arith.constant 0 : index
    %c0_3 = arith.constant 0 : index
    %3 = vector.load %arg2[%c0, %c0_1, %c0_2, %c0_3] : memref<4x3x2x128xf32, #tpu.memory_space<vmem>>, vector<4x3x2x128xf32>
    %c0_4 = arith.constant 0 : index
    %c0_5 = arith.constant 0 : index
    %c0_6 = arith.constant 0 : index
    %4 = vector.load %arg4[%c0_4, %c0_5, %c0_6] : memref<4x3x128xf32, #tpu.memory_space<vmem>>, vector<4x3x128xf32>
    %cst = arith.constant dense<0.000000e+00> : vector<4x3x128xf32>
    %5 = vector.multi_reduction <add>, %3, %cst [2] : vector<4x3x2x128xf32> to vector<4x3x128xf32>
    %6 = arith.addf %4, %5 : vector<4x3x128xf32>
    %c0_7 = arith.constant 0 : index
    %c0_8 = arith.constant 0 : index
    %c0_9 = arith.constant 0 : index
    %7 = vector.load %arg4[%c0_7, %c0_8, %c0_9] : memref<4x3x128xf32, #tpu.memory_space<vmem>>, vector<4x3x128xf32>
    tpu.vector_store %arg4[%c0_7, %c0_8, %c0_9], %6 {strides = array<i32>} : memref<4x3x128xf32, #tpu.memory_space<vmem>>, vector<4x3x128xf32>,
    %c0_i32_10 = arith.constant 0 : i32
    %8 = arith.cmpi eq, %arg1, %c0_i32_10 : i32
    %9 = arith.extui %8 : i1 to i32
    %c0_i32_11 = arith.constant 0 : i32
    %10 = arith.cmpi ne, %9, %c0_i32_11 : i32
    scf.if %10 {
      %c0_12 = arith.constant 0 : index
      %c0_13 = arith.constant 0 : index
      %c0_14 = arith.constant 0 : index
      %11 = vector.load %arg4[%c0_12, %c0_13, %c0_14] : memref<4x3x128xf32, #tpu.memory_space<vmem>>, vector<4x3x128xf32>
      %cst_15 = arith.constant dense<0.000000e+00> : vector<4x3xf32>
      %12 = vector.multi_reduction <add>, %11, %cst_15 [2] : vector<4x3x128xf32> to vector<4x3xf32>
      %cst_16 = arith.constant 3.906250e-03 : f32
      %13 = vector.broadcast %cst_16 : f32 to vector<4x3xf32>
      %14 = arith.mulf %12, %13 : vector<4x3xf32>
      %15 = vector.extract_strided_slice %14 {offsets = [0, 0], sizes = [4, 1], strides = [1, 1]} : vector<4x3xf32> to vector<4x1xf32>
      %16 = vector.extract_strided_slice %14 {offsets = [0, 1], sizes = [4, 1], strides = [1, 1]} : vector<4x3xf32> to vector<4x1xf32>
      %17 = vector.extract_strided_slice %14 {offsets = [0, 2], sizes = [4, 1], strides = [1, 1]} : vector<4x3xf32> to vector<4x1xf32>
      %18 = arith.subf %15, %16 : vector<4x1xf32>
      %19 = arith.mulf %18, %18 : vector<4x1xf32>
      %20 = arith.subf %15, %17 : vector<4x1xf32>
      %21 = arith.mulf %20, %20 : vector<4x1xf32>
      %22 = arith.subf %17, %16 : vector<4x1xf32>
      %23 = arith.mulf %22, %22 : vector<4x1xf32>
      %24 = arith.mulf %19, %19 : vector<4x1xf32>
      %25 = arith.mulf %21, %21 : vector<4x1xf32>
      %26 = arith.addf %24, %25 : vector<4x1xf32>
      %27 = arith.mulf %23, %23 : vector<4x1xf32>
      %28 = arith.addf %26, %27 : vector<4x1xf32>
      %29 = math.sqrt %28 : vector<4x1xf32>
      %30 = vector.shape_cast %29 : vector<4x1xf32> to vector<4x1x1x1xf32>
      %c0_17 = arith.constant 0 : index
      %c0_18 = arith.constant 0 : index
      %c0_19 = arith.constant 0 : index
      %c0_20 = arith.constant 0 : index
      %31 = vector.load %arg3[%c0_17, %c0_18, %c0_19, %c0_20] : memref<4x1x1x1xf32, #tpu.memory_space<vmem>>, vector<4x1x1x1xf32>
      tpu.vector_store %arg3[%c0_17, %c0_18, %c0_19, %c0_20], %30 {strides = array<i32>} : memref<4x1x1x1xf32, #tpu.memory_space<vmem>>, vector<4x1x1x1xf32>,
    } else {
    }
    return
  }
  func.func @transform_0(%arg0: i32, %arg1: i32) -> (i32, i32, i32, i32) {
    %c0_i32 = arith.constant 0 : i32
    %c0_i32_0 = arith.constant 0 : i32
    %c0_i32_1 = arith.constant 0 : i32
    return %arg0, %c0_i32, %arg1, %c0_i32_0 : i32, i32, i32, i32
  }
  func.func @transform_1(%arg0: i32, %arg1: i32) -> (i32, i32, i32, i32) {
    %c0_i32 = arith.constant 0 : i32
    %c0_i32_0 = arith.constant 0 : i32
    %c0_i32_1 = arith.constant 0 : i32
    %c0_i32_2 = arith.constant 0 : i32
    return %arg0, %c0_i32, %c0_i32_0, %c0_i32_1 : i32, i32, i32, i32
  }
}

</mosaic_0001>

<llo_original>
// kernel: tpu_custom_call.1
$region0: #{tpu_custom_call.1}
  #allocation0 [shape = 'u32[]', space=smem, size = 0x4, offset = 0x4, fixed_abs, tag = 'smem constant byte address 0x4 - core index']
  #allocation1 [shape = 'u32[144,128]{1,0:T(1,128)}', space=vmem, size = 0x12000, scoped, tag = 'internal scratch']
  #allocation2 [shape = 'f32[4,3,128]{2,1,0:T(4,128)}', space=vmem, size = 0x2000, scoped, tag = 'scratch operand']
  %s0 = inlined_call_operand.hbm [shape: f32[8,3,2,128], index: 0, kind: input, shape index: {}]
  %s1 = inlined_call_operand.vmem [shape: f32[8,1,1,1], index: 1, kind: output, shape index: {}]
  %s2 = sld [smem:[#allocation0]]
  $region49: #{tpu_custom_call.1} parent=0
    _
  %s4 = ssub.s32 1, %s2
  %s5 = scalar_select 0, %s4, %s2
  $region1: #{tpu_custom_call.1} parent=0
    #allocation3 [shape = 'u8[24576]{0}', space=vmem, size = 0x6000, scoped, tag = 'input window, operand 0']
    #allocation4 [shape = 's32[2]{0}', space=sflag, size = 0x8, scoped, tag = 'scoped memory for tpu_custom_call.1']
    %6 = vsyncpa [#allocation4], 0
    %s7 = scalar_lea.sflag [#allocation4], 1
    %8 = vsyncpa %s7, 0
    loop: start=0, step=1, limit=4
    $region2: #{tpu_custom_call.1} parent=1 // loop_pre_header
      _
    $region3: #{tpu_custom_call.1} parent=1 // loop_header
      %s10 = sphi 0, %s14
      %p11 = scmp.ge.s32.totalorder %s10, 4
      %s17 = sphi 0, %s29
      %s18 = sphi 0, %s25
      %s19 = sphi 0, %s17
      %s20 = sphi 0, %s18
      %s21 = sphi 0, %s19
      %s22 = sphi 0, %s20
      %s34 = sphi 0, %s36
      %s37 = sphi 0, %s34
      %s38 = sphi 0, %s37
      %s54 = sphi 0, %s38
      %s60 = sphi 0, %s62
      %s63 = sphi 0, %s60
      %s64 = sphi 0, %s63
      %s80 = sphi 0, %s64
    $region4: #{tpu_custom_call.1} parent=1 // loop_header_branch
      %13 = sbr.rel (%p11) target = $region8
    $region5: #{tpu_custom_call.1} parent=1 // loop_body
      %s15 = ssub.s32 %s10, 1
      %s16 = ssub.s32 %s10, 2
      %s23 = sadd.s32 1, %s18
      %p24 = scmp.ge.s32.totalorder %s23, 1
      %s25 = scalar_select %p24, 0, %s23
      %s26 = sadd.s32 1, %s17
      %s27 = scalar_select %p24, %s26, %s17
      %p28 = scmp.ge.s32.totalorder %s27, 2
      %s29 = scalar_select %p28, 0, %s27
      %s30 = ssub.s32 %s17, %s29
      %s31 = ssub.s32 %s18, %s25
      %s32 = sor.u32 %s30, %s31
      %p33 = scmp.eq.s32.totalorder %s32, 0
      %s35 = sadd.s32 %s34, 1
      %s36 = scalar_select %p33, %s34, %s35
      %p39 = pneg %p33
      %p40 = scmp.eq.s32.totalorder %s10, 1
      %p41 = por %p39, %p40
      %p42 = scmp.ne.s32.totalorder %s34, %s37
      %p43 = scmp.eq.s32.totalorder %s10, 0
      %p44 = por %p42, %p43
      %p45 = scmp.ne.s32.totalorder %s34, %s37
      %p46 = scmp.eq.s32.totalorder %s15, 1
      %p47 = por %p45, %p46
      %p48 = scmp.ne.s32.totalorder %s37, %s38
      %p49 = scmp.eq.s32.totalorder %s15, 0
      %p50 = por %p48, %p49
      %p51 = scmp.ne.s32.totalorder %s37, %s38
      %p52 = scmp.eq.s32.totalorder %s16, 1
      %p53 = por %p51, %p52
      %p55 = scmp.ne.s32.totalorder %s38, %s54
      %p56 = scmp.eq.s32.totalorder %s16, 0
      %p57 = por %p55, %p56
      %s58 = ssub.s32 %s17, %s29
      %p59 = scmp.eq.s32.totalorder %s58, 0
      %s61 = sadd.s32 %s60, 1
      %s62 = scalar_select %p59, %s60, %s61
      %p65 = pneg %p59
      %p66 = scmp.eq.s32.totalorder %s10, 1
      %p67 = por %p65, %p66
      %p68 = scmp.ne.s32.totalorder %s60, %s63
      %p69 = scmp.eq.s32.totalorder %s10, 0
      %p70 = por %p68, %p69
      %p71 = scmp.ne.s32.totalorder %s60, %s63
      %p72 = scmp.eq.s32.totalorder %s15, 1
      %p73 = por %p71, %p72
      %p74 = scmp.ne.s32.totalorder %s63, %s64
      %p75 = scmp.eq.s32.totalorder %s15, 0
      %p76 = por %p74, %p75
      %p77 = scmp.ne.s32.totalorder %s63, %s64
      %p78 = scmp.eq.s32.totalorder %s16, 1
      %p79 = por %p77, %p78
      %p81 = scmp.ne.s32.totalorder %s64, %s80
      %p82 = scmp.eq.s32.totalorder %s16, 0
      %p83 = por %p81, %p82
      %p84 = scmp.le.s32.totalorder 1, %s10
      %p85 = scmp.lt.s32.totalorder %s10, 3
      %p86 = pnand %p84, %p85
      %p87 = pneg %p86
      // Predicated region
      $region9: #{tpu_custom_call.1} parent=5 // pred_check
        _
      $region10: #{tpu_custom_call.1} parent=5 // pred_check_branch
        %89 = sbr.rel (%p86) target = $region12
      $region11: #{tpu_custom_call.1} parent=5 // pred_region
        %s90 = ssub.s32 %s10, 1
      $region12: #{tpu_custom_call.1} parent=5 // pred_fallthru
        _
      %p91 = scmp.lt.s32.totalorder %s10, 2
      // Predicated region
      $region13: #{tpu_custom_call.1} parent=5 // pred_check
        %p92 = pneg %p91
      $region14: #{tpu_custom_call.1} parent=5 // pred_check_branch
        %94 = sbr.rel (%p92) target = $region16
      $region15: #{tpu_custom_call.1} parent=5 // pred_region
        // Predicated region
        $region17: #{tpu_custom_call.1} parent=15 // pred_check
          %p95 = pneg %p44
        $region18: #{tpu_custom_call.1} parent=15 // pred_check_branch
          %97 = sbr.rel (%p95) target = $region20
        $region19: #{tpu_custom_call.1} parent=15 // pred_region
          %s98 = sand.u32 %s34, 1
          %s99 = scalar_lea.sflag [#allocation4], %s98
          %s100 = sand.u32 %s34, 1
          %s101 = smul.addr %s100, 24
          %s102 = scalar_lea.vmem [#allocation3], %s101
          %s103 = smul.u32 4, %s17
          %s105 = ssub.s32 384, 384
          %106 = vsyncadd %s99, %s105
          %s107 = smul.addr %s103, 3
          %s108 = sadd.s32 %s18, %s107
          %s109 = smul.addr %s108, 32
          %s110 = scalar_lea.hbm %s0, %s109
          %s111 = sshll.u32 %s102, 4
          %s112 = int_to_ptr.vmem [resolvable:$true] %s111
          %117 = dma.hbm_to_vmem [thread:$0]  %s110, 384, %s112, %s99, 32, 32, 2
        $region20: #{tpu_custom_call.1} parent=15 // pred_fallthru
          _
      $region16: #{tpu_custom_call.1} parent=5 // pred_fallthru
        _
      %p118 = scmp.le.s32.totalorder 1, %s10
      %p119 = scmp.lt.s32.totalorder %s10, 3
      %p120 = pnand %p118, %p119
      %p121 = pneg %p120
      // Predicated region
      $region21: #{tpu_custom_call.1} parent=5 // pred_check
        _
      $region22: #{tpu_custom_call.1} parent=5 // pred_check_branch
        %123 = sbr.rel (%p120) target = $region24
      $region23: #{tpu_custom_call.1} parent=5 // pred_region
        %s124 = ssub.s32 %s10, 1
        %s125 = sand.u32 %s37, 1
        %s126 = scalar_lea.sflag [#allocation4], %s125
        %s127 = sand.u32 %s37, 1
        %s128 = smul.addr %s127, 24
        %s129 = scalar_lea.vmem [#allocation3], %s128
        // Predicated region
        $region25: #{tpu_custom_call.1} parent=23 // pred_check
          %p130 = pneg %p50
        $region26: #{tpu_custom_call.1} parent=23 // pred_check_branch
          %132 = sbr.rel (%p130) target = $region28
        $region27: #{tpu_custom_call.1} parent=23 // pred_region
          %133 = dma.done %s126, 384
        $region28: #{tpu_custom_call.1} parent=23 // pred_fallthru
          _
        %s134 = sand.u32 %s37, 1
        %s135 = scalar_lea.sflag [#allocation4], %s134
        %s136 = sand.u32 %s37, 1
        %s137 = smul.addr %s136, 24
        %s138 = scalar_lea.vmem [#allocation3], %s137
        %p139 = pneg %p50
        %p140 = pneg %p47
        %p141 = pneg %p76
        %p142 = pneg %p73
        %s143 = smul.u32 4, %s19
        %p144 = scmp.lt.s32.totalorder %s143, 7
        %s145 = scalar_select %p144, %s143, 7
        %s146 = scalar_lea.vmem %s1, %s145
        %s147 = smul.u32 4, %s19
        %s148 = smul.u32 4, %s19
        %p149 = scmp.lt.s32.totalorder %s148, 7
        %s150 = scalar_select %p149, %s148, 7
        %s151 = scalar_lea.vmem %s1, %s150
        %s152 = smul.u32 4, %s19
        %p153 = scmp.eq.s32.totalorder %s20, 0
        // Predicated region
        $region29: #{tpu_custom_call.1} parent=23 // pred_check
          %p154 = pneg %p153
        $region30: #{tpu_custom_call.1} parent=23 // pred_check_branch
          %156 = sbr.rel (%p154) target = $region32
        $region31: #{tpu_custom_call.1} parent=23 // pred_region
          %157 = vst [vmem:[#allocation2] sm:$0x7] 0.0
          %158 = vst [vmem:[#allocation2 + $0x4] sm:$0x7] 0.0
          %159 = vst [vmem:[#allocation2 + $0x8] sm:$0x7] 0.0
          %160 = vst [vmem:[#allocation2 + $0xc] sm:$0x7] 0.0
        $region32: #{tpu_custom_call.1} parent=23 // pred_fallthru
          _
        %v161 = vld [vmem:[%s129] sm:$0x3]
        %v162 = vld [vmem:[%s129 + $0x2] sm:$0x3]
        %v163 = vld [vmem:[%s129 + $0x4] sm:$0x3]
        %v164 = vld [vmem:[%s129 + $0x6] sm:$0x3]
        %v165 = vld [vmem:[%s129 + $0x8] sm:$0x3]
        %v166 = vld [vmem:[%s129 + $0xa] sm:$0x3]
        %v167 = vld [vmem:[%s129 + $0xc] sm:$0x3]
        %v168 = vld [vmem:[%s129 + $0xe] sm:$0x3]
        %v169 = vld [vmem:[%s129 + $0x10] sm:$0x3]
        %v170 = vld [vmem:[%s129 + $0x12] sm:$0x3]
        %v171 = vld [vmem:[%s129 + $0x14] sm:$0x3]
        %v172 = vld [vmem:[%s129 + $0x16] sm:$0x3]
        %v173 = vld [vmem:[#allocation2] sm:$0x7]
        %v174 = vld [vmem:[#allocation2 + $0x4] sm:$0x7]
        %v175 = vld [vmem:[#allocation2 + $0x8] sm:$0x7]
        %v176 = vld [vmem:[#allocation2 + $0xc] sm:$0x7]
        %vm177 = vcmask 1041408
        %v178 = vsel %vm177, %v161, 0.0
        %v179 = vrot.slane %v178, 4
        %v180 = vadd.f32 %v178, %v179
        %v181 = vrot.slane %v180, 2
        %v182 = vadd.f32 %v180, %v181
        %v183 = vrot.slane %v182, 1
        %v184 = vadd.f32 %v182, %v183
        %v185 = vsel %vm177, %v162, 0.0
        %v186 = vrot.slane %v185, 4
        %v187 = vadd.f32 %v185, %v186
        %v188 = vrot.slane %v187, 2
        %v189 = vadd.f32 %v187, %v188
        %v190 = vrot.slane %v189, 1
        %v191 = vadd.f32 %v189, %v190
        %v192 = vsel %vm177, %v163, 0.0
        %v193 = vrot.slane %v192, 4
        %v194 = vadd.f32 %v192, %v193
        %v195 = vrot.slane %v194, 2
        %v196 = vadd.f32 %v194, %v195
        %v197 = vrot.slane %v196, 1
        %v198 = vadd.f32 %v196, %v197
        %v199 = vsel %vm177, %v164, 0.0
        %v200 = vrot.slane %v199, 4
        %v201 = vadd.f32 %v199, %v200
        %v202 = vrot.slane %v201, 2
        %v203 = vadd.f32 %v201, %v202
        %v204 = vrot.slane %v203, 1
        %v205 = vadd.f32 %v203, %v204
        %v206 = vsel %vm177, %v165, 0.0
        %v207 = vrot.slane %v206, 4
        %v208 = vadd.f32 %v206, %v207
        %v209 = vrot.slane %v208, 2
        %v210 = vadd.f32 %v208, %v209
        %v211 = vrot.slane %v210, 1
        %v212 = vadd.f32 %v210, %v211
        %v213 = vsel %vm177, %v166, 0.0
        %v214 = vrot.slane %v213, 4
        %v215 = vadd.f32 %v213, %v214
        %v216 = vrot.slane %v215, 2
        %v217 = vadd.f32 %v215, %v216
        %v218 = vrot.slane %v217, 1
        %v219 = vadd.f32 %v217, %v218
        %v220 = vsel %vm177, %v167, 0.0
        %v221 = vrot.slane %v220, 4
        %v222 = vadd.f32 %v220, %v221
        %v223 = vrot.slane %v222, 2
        %v224 = vadd.f32 %v222, %v223
        %v225 = vrot.slane %v224, 1
        %v226 = vadd.f32 %v224, %v225
        %v227 = vsel %vm177, %v168, 0.0
        %v228 = vrot.slane %v227, 4
        %v229 = vadd.f32 %v227, %v228
        %v230 = vrot.slane %v229, 2
        %v231 = vadd.f32 %v229, %v230
        %v232 = vrot.slane %v231, 1
        %v233 = vadd.f32 %v231, %v232
        %v234 = vsel %vm177, %v169, 0.0
        %v235 = vrot.slane %v234, 4
        %v236 = vadd.f32 %v234, %v235
        %v237 = vrot.slane %v236, 2
        %v238 = vadd.f32 %v236, %v237
        %v239 = vrot.slane %v238, 1
        %v240 = vadd.f32 %v238, %v239
        %v241 = vsel %vm177, %v170, 0.0
        %v242 = vrot.slane %v241, 4
        %v243 = vadd.f32 %v241, %v242
        %v244 = vrot.slane %v243, 2
        %v245 = vadd.f32 %v243, %v244
        %v246 = vrot.slane %v245, 1
        %v247 = vadd.f32 %v245, %v246
        %v248 = vsel %vm177, %v171, 0.0
        %v249 = vrot.slane %v248, 4
        %v250 = vadd.f32 %v248, %v249
        %v251 = vrot.slane %v250, 2
        %v252 = vadd.f32 %v250, %v251
        %v253 = vrot.slane %v252, 1
        %v254 = vadd.f32 %v252, %v253
        %v255 = vsel %vm177, %v172, 0.0
        %v256 = vrot.slane %v255, 4
        %v257 = vadd.f32 %v255, %v256
        %v258 = vrot.slane %v257, 2
        %v259 = vadd.f32 %v257, %v258
        %v260 = vrot.slane %v259, 1
        %v261 = vadd.f32 %v259, %v260
        %vm274 = vcmask 1041409
        %v275 = vsel %vm274, %v191, %v184
        %vm276 = vcmask 1042434
        %v277 = vsel %vm276, %v198, %v275
        %v278 = vsel %vm274, %v212, %v205
        %v279 = vsel %vm276, %v219, %v278
        %v280 = vsel %vm274, %v233, %v226
        %v281 = vsel %vm276, %v240, %v280
        %v282 = vsel %vm274, %v254, %v247
        %v283 = vsel %vm276, %v261, %v282
        %v288 = vadd.f32 %v173, %v277
        %v289 = vadd.f32 %v174, %v279
        %v290 = vadd.f32 %v175, %v281
        %v291 = vadd.f32 %v176, %v283
        %292 = vst [vmem:[#allocation2] sm:$0x7] %v288
        %293 = vst [vmem:[#allocation2 + $0x4] sm:$0x7] %v289
        %294 = vst [vmem:[#allocation2 + $0x8] sm:$0x7] %v290
        %295 = vst [vmem:[#allocation2 + $0xc] sm:$0x7] %v291
        // Predicated region
        $region33: #{tpu_custom_call.1} parent=23 // pred_check
          %p296 = pneg %p153
        $region34: #{tpu_custom_call.1} parent=23 // pred_check_branch
          %298 = sbr.rel (%p296) target = $region36
        $region35: #{tpu_custom_call.1} parent=23 // pred_region
          %v299 = vld [vmem:[#allocation2] sm:$0x7]
          %v300 = vld [vmem:[#allocation2 + $0x4] sm:$0x7]
          %v301 = vld [vmem:[#allocation2 + $0x8] sm:$0x7]
          %v302 = vld [vmem:[#allocation2 + $0xc] sm:$0x7]
          %vm303 = vcmask 1042432
          %v304 = vsel %vm303, %v299, 0.0
          %305 = vadd.xlane.f32.xlu0 %v304
          %v306 = vpop.xlane.xlu0 %305
          %v307 = vsel %vm303, %v300, 0.0
          %308 = vadd.xlane.f32.xlu0 %v307
          %v309 = vpop.xlane.xlu0 %308
          %v310 = vsel %vm303, %v301, 0.0
          %311 = vadd.xlane.f32.xlu0 %v310
          %v312 = vpop.xlane.xlu0 %311
          %v313 = vsel %vm303, %v302, 0.0
          %314 = vadd.xlane.f32.xlu0 %v313
          %v315 = vpop.xlane.xlu0 %314
          %v316 = vmul.f32 %v306, 0.00390625
          %v317 = vmul.f32 %v309, 0.00390625
          %v318 = vmul.f32 %v312, 0.00390625
          %v319 = vmul.f32 %v315, 0.00390625
          %v324 = vrot.slane %v316, 1
          %v325 = vrot.slane %v317, 1
          %v326 = vrot.slane %v318, 1
          %v327 = vrot.slane %v319, 1
          %v332 = vsub.f32 %v316, %v324
          %v333 = vsub.f32 %v317, %v325
          %v334 = vsub.f32 %v318, %v326
          %v335 = vsub.f32 %v319, %v327
          %v336 = vmul.f32 %v332, %v332
          %v337 = vmul.f32 %v333, %v333
          %v338 = vmul.f32 %v334, %v334
          %v339 = vmul.f32 %v335, %v335
          %v340 = vrot.slane %v316, 2
          %v341 = vrot.slane %v317, 2
          %v342 = vrot.slane %v318, 2
          %v343 = vrot.slane %v319, 2
          %v348 = vsub.f32 %v316, %v340
          %v349 = vsub.f32 %v317, %v341
          %v350 = vsub.f32 %v318, %v342
          %v351 = vsub.f32 %v319, %v343
          %v352 = vmul.f32 %v348, %v348
          %v353 = vmul.f32 %v349, %v349
          %v354 = vmul.f32 %v350, %v350
          %v355 = vmul.f32 %v351, %v351
          %v356 = vrot.slane %v316, 7
          %v357 = vrot.slane %v317, 7
          %v358 = vrot.slane %v318, 7
          %v359 = vrot.slane %v319, 7
          %v364 = vsub.f32 %v316, %v356
          %v365 = vsub.f32 %v317, %v357
          %v366 = vsub.f32 %v318, %v358
          %v367 = vsub.f32 %v319, %v359
          %v368 = vmul.f32 %v364, %v364
          %v369 = vmul.f32 %v365, %v365
          %v370 = vmul.f32 %v366, %v366
          %v371 = vmul.f32 %v367, %v367
          %v372 = vmul.f32 %v336, %v336
          %v373 = vmul.f32 %v337, %v337
          %v374 = vmul.f32 %v338, %v338
          %v375 = vmul.f32 %v339, %v339
          %v376 = vmul.f32 %v352, %v352
          %v377 = vmul.f32 %v353, %v353
          %v378 = vmul.f32 %v354, %v354
          %v379 = vmul.f32 %v355, %v355
          %v380 = vadd.f32 %v372, %v376
          %v381 = vadd.f32 %v373, %v377
          %v382 = vadd.f32 %v374, %v378
          %v383 = vadd.f32 %v375, %v379
          %v384 = vmul.f32 %v368, %v368
          %v385 = vmul.f32 %v369, %v369
          %v386 = vmul.f32 %v370, %v370
          %v387 = vmul.f32 %v371, %v371
          %v392 = vrot.slane %v384, 2
          %v393 = vrot.slane %v385, 2
          %v394 = vrot.slane %v386, 2
          %v395 = vrot.slane %v387, 2
          %v400 = vadd.f32 %v380, %v392
          %v401 = vadd.f32 %v381, %v393
          %v402 = vadd.f32 %v382, %v394
          %v403 = vadd.f32 %v383, %v395
          %v404 = vrsqrt.pop %v400
          %v405 = vmul.f32 %v400, %v404
          %vm406 = vcmp.eq.f32.partialorder %v400, inf
          %v407 = vsel %vm406, %v400, %v405
          %vm408 = vcmp.eq.f32.partialorder %v400, 0.0
          %v409 = vand.u32 %v400, 2147483648
          %v410 = vsel %vm408, %v409, %v407
          %v411 = vrsqrt.pop %v401
          %v412 = vmul.f32 %v401, %v411
          %vm413 = vcmp.eq.f32.partialorder %v401, inf
          %v414 = vsel %vm413, %v401, %v412
          %vm415 = vcmp.eq.f32.partialorder %v401, 0.0
          %v416 = vand.u32 %v401, 2147483648
          %v417 = vsel %vm415, %v416, %v414
          %v418 = vrsqrt.pop %v402
          %v419 = vmul.f32 %v402, %v418
          %vm420 = vcmp.eq.f32.partialorder %v402, inf
          %v421 = vsel %vm420, %v402, %v419
          %vm422 = vcmp.eq.f32.partialorder %v402, 0.0
          %v423 = vand.u32 %v402, 2147483648
          %v424 = vsel %vm422, %v423, %v421
          %v425 = vrsqrt.pop %v403
          %v426 = vmul.f32 %v403, %v425
          %vm427 = vcmp.eq.f32.partialorder %v403, inf
          %v428 = vsel %vm427, %v403, %v426
          %vm429 = vcmp.eq.f32.partialorder %v403, 0.0
          %v430 = vand.u32 %v403, 2147483648
          %v431 = vsel %vm429, %v430, %v428
          %vm432 = vcmask 0
          %433 = vst.msk [vmem:[%s151] sm:$0x1] %vm432, %v410
          %434 = vst.msk [vmem:[%s151 + $0x1] sm:$0x1] %vm432, %v417
          %435 = vst.msk [vmem:[%s151 + $0x2] sm:$0x1] %vm432, %v424
          %436 = vst.msk [vmem:[%s151 + $0x3] sm:$0x1] %vm432, %v431
        $region36: #{tpu_custom_call.1} parent=23 // pred_fallthru
          _
        %s437 = smul.u32 4, %s19
        %p438 = scmp.lt.s32.totalorder %s437, 7
        %s439 = scalar_select %p438, %s437, 7
        %s440 = scalar_lea.vmem %s1, %s439
        // Predicated region
        $region37: #{tpu_custom_call.1} parent=23 // pred_check
          %p441 = pneg %p73
        $region38: #{tpu_custom_call.1} parent=23 // pred_check_branch
          %443 = sbr.rel (%p441) target = $region40
        $region39: #{tpu_custom_call.1} parent=23 // pred_region
          %s444 = smul.u32 4, %s19
        $region40: #{tpu_custom_call.1} parent=23 // pred_fallthru
          _
      $region24: #{tpu_custom_call.1} parent=5 // pred_fallthru
        _
      %p445 = scmp.le.s32.totalorder 2, %s10
      // Predicated region
      $region41: #{tpu_custom_call.1} parent=5 // pred_check
        %p446 = pneg %p445
      $region42: #{tpu_custom_call.1} parent=5 // pred_check_branch
        %448 = sbr.rel (%p446) target = $region44
      $region43: #{tpu_custom_call.1} parent=5 // pred_region
        %s449 = ssub.s32 %s10, 2
        // Predicated region
        $region45: #{tpu_custom_call.1} parent=43 // pred_check
          %p450 = pneg %p79
        $region46: #{tpu_custom_call.1} parent=43 // pred_check_branch
          %452 = sbr.rel (%p450) target = $region48
        $region47: #{tpu_custom_call.1} parent=43 // pred_region
          %s453 = smul.u32 4, %s21
          %p454 = scmp.lt.s32.totalorder %s453, 7
          %s455 = scalar_select %p454, %s453, 7
          %s456 = scalar_lea.vmem %s1, %s455
        $region48: #{tpu_custom_call.1} parent=43 // pred_fallthru
          _
      $region44: #{tpu_custom_call.1} parent=5 // pred_fallthru
        _
    $region6: #{tpu_custom_call.1} parent=1 // loop_footer
      %s14 = sadd.s32 1, %s10
    $region7: #{tpu_custom_call.1} parent=1 // loop_footer_branch
      %9 = sbr.rel target = $region3
    $region8: #{tpu_custom_call.1} parent=1 // loop_exit
      _
    %457 = vsyncpa [#allocation4], 1
    %s458 = scalar_lea.sflag [#allocation4], 1
    %459 = vsyncpa %s458, 1

</llo_original>
